<compile_context>
chip_gen: v6e
topology: v6e:2x2x1
jax: 0.10.0
libtpu: 0.0.40
codegen_flags: <defaults>
</compile_context>

<pallas_src>
import math

import jax
import jax.numpy as jnp
from jax.experimental import pallas as pl
from jax.experimental.pallas import tpu as pltpu


def _round_up(x: int, m: int) -> int:
    return ((x + m - 1) // m) * m


def _vmem_capacity_bytes() -> int:
    try:
        return int(pltpu.get_tpu_info().vmem_capacity_bytes)
    except Exception:
        return 64 << 20  # conservative fallback = v7x per-TensorCore VMEM


def _fold_factor(num_seq: int, num_label: int) -> int:
    """Fold k consecutive timesteps into one kernel row so the lane (label)
    axis becomes a multiple of 128 -> no lane-padding waste in DMA/VMEM."""
    if num_label % 128 == 0:
        return 1
    k = 128 // math.gcd(num_label, 128)
    if k <= 1 or k > 16 or num_seq % k != 0:
        # TODO(synk): handle non-dividing k with a ragged tail tile instead of
        # dropping the fold (avoids giving up for e.g. char vocabularies of 29).
        return 1
    return k


def _pick_block_rows(n_rows: int, row_bytes: int, vmem_limit: int) -> int:
    """Byte-based tile sizing: target ~8 MiB per (double-buffered) input tile
    so per-grid-step overhead (~0.35 us) is negligible vs. the tile DMA."""
    target = min(8 << 20, vmem_limit // 3)
    bs = max(8, ((target // row_bytes) // 8) * 8)
    # Keep >= 2 sequence tiles for non-trivial inputs so v7x's two TensorCores
    # both get work via the "parallel" grid axis (no-op on v5e/v6e).
    if n_rows * row_bytes >= (4 << 20):
        half = _round_up(-(-n_rows // 2), 8)
        bs = min(bs, max(8, half))
    if bs >= n_rows:
        return n_rows
    return bs


def _make_argmax_kernel(num_label: int, k: int):
    """Kernel over a (block_rows, k*num_label) tile: k segmented argmaxes per
    row (k timesteps folded per row), computed in the input dtype."""

    def kernel(em_ref, idx_ref):
        em = em_ref[...]                           # input dtype; no f32 upcast
        bs = em.shape[0]
        label_iota = jax.lax.broadcasted_iota(jnp.int32, (bs, num_label), 1)
        cols = []
        for s in range(k):
            seg = em[:, s * num_label:(s + 1) * num_label]      # (bs, L)
            maxval = jnp.max(seg, axis=1, keepdims=True)        # (bs, 1)
            # First-max-wins argmax (matches jnp.argmax tie-breaking).
            idx = jnp.min(
                jnp.where(seg == maxval, label_iota, jnp.int32(num_label)),
                axis=1, keepdims=True)
            # All-NaN rows match nothing -> num_label; clamp to stay in range.
            cols.append(jnp.minimum(idx, jnp.int32(num_label - 1)))
        out = cols[0] if k == 1 else jnp.concatenate(cols, axis=1)
        idx_ref[...] = out.astype(jnp.int32)

    return kernel


def greedy_ctc_decode(emission: jax.Array, blank: int = 0, block_s=None):
    """emission: [num_seq, num_label] logits (PyTorch layout, f32 or bf16).

    Returns (decoded, count):
      decoded: int32[num_seq]; first `count` entries are the decoded labels,
               remaining entries are -1 padding.
      count:   int32 scalar, number of valid decoded labels.

    `block_s`, if given, is the number of kernel rows per tile (rows of the
    possibly-folded input; each row covers k timesteps when folding applies).
    """
    S, L = emission.shape

    if S < 128 and block_s is None:
        # Toy sequence lengths: grid-step + custom-call overhead dominates;
        # plain XLA argmax is faster and bit-identical.
        idx = jnp.argmax(emission, axis=-1).astype(jnp.int32)
    else:
        itemsize = jnp.dtype(emission.dtype).itemsize
        vmem_bytes = _vmem_capacity_bytes()
        # 3/4 of physical VMEM: 48 MiB on v7x (64 MiB/TC), 96 MiB on v5e/v6e.
        vmem_limit = int(max(32 << 20, min((vmem_bytes * 3) // 4, 96 << 20)))

        k = _fold_factor(S, L)
        n_rows, width = S // k, k * L
        em2d = emission.reshape(n_rows, width) if k > 1 else emission

        row_bytes = _round_up(width, 128) * itemsize   # lane-padded row cost
        if block_s is not None:
            bs = min(int(block_s), n_rows)
            if bs < n_rows:
                bs = max(8, (bs // 8) * 8)             # sublane alignment
        else:
            bs = _pick_block_rows(n_rows, row_bytes, vmem_limit)

        idx2d = pl.pallas_call(
            _make_argmax_kernel(L, k),
            out_shape=jax.ShapeDtypeStruct((n_rows, k), jnp.int32),
            grid=(pl.cdiv(n_rows, bs),),
            in_specs=[pl.BlockSpec((bs, width), lambda i: (i, 0))],
            out_specs=pl.BlockSpec((bs, k), lambda i: (i, 0)),
            compiler_params=pltpu.CompilerParams(
                dimension_semantics=("parallel",),
                vmem_limit_bytes=vmem_limit,
            ),
            cost_estimate=pl.CostEstimate(
                flops=2 * S * L,
                transcendentals=0,
                bytes_accessed=S * L * itemsize + S * 4,
            ),
        )(em2d)
        idx = idx2d.reshape(-1)[:S]    # n_rows * k == S (fold requires S % k == 0)

    # XLA glue: unique_consecutive + blank filter + compaction on int32[S].
    pos = jnp.arange(S, dtype=jnp.int32)
    prev = jnp.concatenate([idx[:1], idx[:-1]])
    keep = (idx != jnp.int32(blank)) & ((pos == 0) | (idx != prev))
    keep_i = keep.astype(jnp.int32)
    dest = jnp.where(keep, jnp.cumsum(keep_i) - 1, S)   # S => dropped
    decoded = jnp.full((S,), -1, jnp.int32).at[dest].set(
        jnp.where(keep, idx, -1), mode="drop")
    count = jnp.sum(keep_i)
    return decoded, count


def _reference_decode(emission, blank=0):
    # Pure-numpy reference of the same semantics, for a sanity check.
    import numpy as np
    em = np.asarray(emission, dtype=np.float32)
    idx = em.argmax(axis=-1)
    out, prev = [], None
    for i in idx:
        if prev is None or i != prev:
            if i != blank:
                out.append(int(i))
        prev = i
    return out


def _check(emission, blank=0, block_s=None):
    decoded, count = greedy_ctc_decode(emission, blank=blank, block_s=block_s)
    decoded = jax.block_until_ready(decoded)
    count = int(jax.block_until_ready(count))
    got = [int(v) for v in decoded[:count]]
    want = _reference_decode(jnp.asarray(emission, jnp.float32), blank=blank)
    assert got == want, (
        f"mismatch (block_s={block_s}, dtype={emission.dtype}): "
        f"kernel={got[:16]}... reference={want[:16]}...")


if __name__ == "__main__":
    key = jax.random.PRNGKey(0)

    # Folded path: L=32 -> 4 timesteps per 128-lane kernel row, single tile.
    emission = jax.random.normal(key, (300, 32), dtype=jnp.float32)
    _check(emission, blank=0)

    # Same input, forced multi-tile grid with a ragged last tile
    # (75 folded rows, block_s=16 -> 5 grid steps, last tile has 11 rows).
    _check(emission, blank=0, block_s=16)

    # Unfolded path: S % 4 != 0 -> no fold, lane-padded 32-wide block.
    emission2 = jax.random.normal(jax.random.PRNGKey(1), (150, 32),
                                  dtype=jnp.float32)
    _check(emission2, blank=0)

    # bf16 input: argmax computed in the input dtype, no in-kernel upcast.
    _check(emission.astype(jnp.bfloat16), blank=0)

    print("KERNEL_OK")
</pallas_src>

<mosaic_0001>
module attributes {stable_mosaic.version = 11 : i64} {
  func.func @kernel(%arg0: i32, %arg1: memref<75x128xf32, #tpu.memory_space<vmem>>, %arg2: memref<75x4xi32, #tpu.memory_space<vmem>>) attributes {dimension_semantics = [#tpu.dimension_semantics<parallel>], iteration_bounds = array<i64: 1>, scalar_prefetch = 0 : i64, scratch_operands = 0 : i64, tpu.core_type = #tpu.core_type<tc>, window_params = [{transform_indices = @transform_0, window_bounds = array<i64: 75, 128>}, {transform_indices = @transform_1, window_bounds = array<i64: 75, 4>}]} {
    %c0 = arith.constant 0 : index
    %c0_0 = arith.constant 0 : index
    %0 = vector.load %arg1[%c0, %c0_0] : memref<75x128xf32, #tpu.memory_space<vmem>>, vector<75x128xf32>
    %1 = tpu.iota {dimensions = array<i32: 1>} : vector<75x32xi32>
    %2 = vector.extract_strided_slice %0 {offsets = [0, 0], sizes = [75, 32], strides = [1, 1]} : vector<75x128xf32> to vector<75x32xf32>
    %cst = arith.constant dense<0xFF800000> : vector<75xf32>
    %3 = vector.multi_reduction <maximumf>, %2, %cst [1] : vector<75x32xf32> to vector<75xf32>
    %4 = vector.shape_cast %3 : vector<75xf32> to vector<75x1xf32>
    %5 = vector.broadcast %4 : vector<75x1xf32> to vector<75x32xf32>
    %6 = arith.cmpf oeq, %2, %5 : vector<75x32xf32>
    %c32_i32 = arith.constant 32 : i32
    %7 = vector.broadcast %c32_i32 : i32 to vector<75x32xi32>
    %8 = arith.select %6, %1, %7 : vector<75x32xi1>, vector<75x32xi32>
    %cst_1 = arith.constant dense<2147483647> : vector<75xi32>
    %9 = vector.multi_reduction <minsi>, %8, %cst_1 [1] : vector<75x32xi32> to vector<75xi32>
    %10 = vector.shape_cast %9 : vector<75xi32> to vector<75x1xi32>
    %c31_i32 = arith.constant 31 : i32
    %11 = vector.broadcast %c31_i32 : i32 to vector<75x1xi32>
    %12 = arith.minsi %10, %11 : vector<75x1xi32>
    %13 = vector.extract_strided_slice %0 {offsets = [0, 32], sizes = [75, 32], strides = [1, 1]} : vector<75x128xf32> to vector<75x32xf32>
    %cst_2 = arith.constant dense<0xFF800000> : vector<75xf32>
    %14 = vector.multi_reduction <maximumf>, %13, %cst_2 [1] : vector<75x32xf32> to vector<75xf32>
    %15 = vector.shape_cast %14 : vector<75xf32> to vector<75x1xf32>
    %16 = vector.broadcast %15 : vector<75x1xf32> to vector<75x32xf32>
    %17 = arith.cmpf oeq, %13, %16 : vector<75x32xf32>
    %c32_i32_3 = arith.constant 32 : i32
    %18 = vector.broadcast %c32_i32_3 : i32 to vector<75x32xi32>
    %19 = arith.select %17, %1, %18 : vector<75x32xi1>, vector<75x32xi32>
    %cst_4 = arith.constant dense<2147483647> : vector<75xi32>
    %20 = vector.multi_reduction <minsi>, %19, %cst_4 [1] : vector<75x32xi32> to vector<75xi32>
    %21 = vector.shape_cast %20 : vector<75xi32> to vector<75x1xi32>
    %c31_i32_5 = arith.constant 31 : i32
    %22 = vector.broadcast %c31_i32_5 : i32 to vector<75x1xi32>
    %23 = arith.minsi %21, %22 : vector<75x1xi32>
    %24 = vector.extract_strided_slice %0 {offsets = [0, 64], sizes = [75, 32], strides = [1, 1]} : vector<75x128xf32> to vector<75x32xf32>
    %cst_6 = arith.constant dense<0xFF800000> : vector<75xf32>
    %25 = vector.multi_reduction <maximumf>, %24, %cst_6 [1] : vector<75x32xf32> to vector<75xf32>
    %26 = vector.shape_cast %25 : vector<75xf32> to vector<75x1xf32>
    %27 = vector.broadcast %26 : vector<75x1xf32> to vector<75x32xf32>
    %28 = arith.cmpf oeq, %24, %27 : vector<75x32xf32>
    %c32_i32_7 = arith.constant 32 : i32
    %29 = vector.broadcast %c32_i32_7 : i32 to vector<75x32xi32>
    %30 = arith.select %28, %1, %29 : vector<75x32xi1>, vector<75x32xi32>
    %cst_8 = arith.constant dense<2147483647> : vector<75xi32>
    %31 = vector.multi_reduction <minsi>, %30, %cst_8 [1] : vector<75x32xi32> to vector<75xi32>
    %32 = vector.shape_cast %31 : vector<75xi32> to vector<75x1xi32>
    %c31_i32_9 = arith.constant 31 : i32
    %33 = vector.broadcast %c31_i32_9 : i32 to vector<75x1xi32>
    %34 = arith.minsi %32, %33 : vector<75x1xi32>
    %35 = vector.extract_strided_slice %0 {offsets = [0, 96], sizes = [75, 32], strides = [1, 1]} : vector<75x128xf32> to vector<75x32xf32>
    %cst_10 = arith.constant dense<0xFF800000> : vector<75xf32>
    %36 = vector.multi_reduction <maximumf>, %35, %cst_10 [1] : vector<75x32xf32> to vector<75xf32>
    %37 = vector.shape_cast %36 : vector<75xf32> to vector<75x1xf32>
    %38 = vector.broadcast %37 : vector<75x1xf32> to vector<75x32xf32>
    %39 = arith.cmpf oeq, %35, %38 : vector<75x32xf32>
    %c32_i32_11 = arith.constant 32 : i32
    %40 = vector.broadcast %c32_i32_11 : i32 to vector<75x32xi32>
    %41 = arith.select %39, %1, %40 : vector<75x32xi1>, vector<75x32xi32>
    %cst_12 = arith.constant dense<2147483647> : vector<75xi32>
    %42 = vector.multi_reduction <minsi>, %41, %cst_12 [1] : vector<75x32xi32> to vector<75xi32>
    %43 = vector.shape_cast %42 : vector<75xi32> to vector<75x1xi32>
    %c31_i32_13 = arith.constant 31 : i32
    %44 = vector.broadcast %c31_i32_13 : i32 to vector<75x1xi32>
    %45 = arith.minsi %43, %44 : vector<75x1xi32>
    %46 = tpu.concatenate %12, %23, %34, %45 in 1 : vector<75x1xi32>, vector<75x1xi32>, vector<75x1xi32>, vector<75x1xi32> -> vector<75x4xi32>
    %c0_14 = arith.constant 0 : index
    %c0_15 = arith.constant 0 : index
    %47 = vector.load %arg2[%c0_14, %c0_15] : memref<75x4xi32, #tpu.memory_space<vmem>>, vector<75x4xi32>
    tpu.vector_store %arg2[%c0_14, %c0_15], %46 {strides = array<i32>} : memref<75x4xi32, #tpu.memory_space<vmem>>, vector<75x4xi32>,
    return
  }
  func.func @transform_0(%arg0: i32) -> (i32, i32) {
    %c0_i32 = arith.constant 0 : i32
    %c0_i32_0 = arith.constant 0 : i32
    return %arg0, %c0_i32 : i32, i32
  }
  func.func @transform_1(%arg0: i32) -> (i32, i32) {
    %c0_i32 = arith.constant 0 : i32
    %c0_i32_0 = arith.constant 0 : i32
    return %arg0, %c0_i32 : i32, i32
  }
}

</mosaic_0001>

<llo_original>
// kernel: tpu_custom_call.1
$region0: #{tpu_custom_call.1}
  #allocation0 [shape = 'u32[]', space=smem, size = 0x4, offset = 0x4, fixed_abs, tag = 'smem constant byte address 0x4 - core index']
  #allocation1 [shape = 'u32[144,128]{1,0:T(1,128)}', space=vmem, size = 0x12000, scoped, tag = 'internal scratch']
  %s0 = inlined_call_operand.hbm [shape: f32[75,128], index: 0, kind: input, shape index: {}]
  %s1 = inlined_call_operand.vmem [shape: s32[75,4], index: 1, kind: output, shape index: {}]
  %s2 = sld [smem:[#allocation0]]
  $region18: #{tpu_custom_call.1} parent=0
    _
  %s4 = ssub.s32 1, %s2
  %s5 = scalar_select 0, %s4, %s2
  $region1: #{tpu_custom_call.1} parent=0
    #allocation2 [shape = 'u8[40960]{0}', space=vmem, size = 0xa000, scoped, tag = 'input window, operand 0, single buffered']
    #allocation3 [shape = 's32[1]{0}', space=sflag, size = 0x4, scoped, tag = 'scoped memory for tpu_custom_call.1']
    %6 = vsyncpa [#allocation3], 0
    // Predicated region
    $region2: #{tpu_custom_call.1} parent=1 // pred_check
      _
    $region3: #{tpu_custom_call.1} parent=1 // pred_check_branch
      %8 = sbr.rel (0) target = $region5
    $region4: #{tpu_custom_call.1} parent=1 // pred_region
      %s10 = ssub.s32 1280, 1280
      %11 = vsyncadd [#allocation3], %s10
      %s12 = sshll.u32 [#allocation2], 4
      %s13 = int_to_ptr.vmem [resolvable:$true] %s12
      %18 = dma.hbm_to_vmem [thread:$0]  %s0, 1280, %s13, [#allocation3], 128, 128, 8
    $region5: #{tpu_custom_call.1} parent=1 // pred_fallthru
      _
    // Predicated region
    $region6: #{tpu_custom_call.1} parent=1 // pred_check
      _
    $region7: #{tpu_custom_call.1} parent=1 // pred_check_branch
      %20 = sbr.rel (0) target = $region9
    $region8: #{tpu_custom_call.1} parent=1 // pred_region
      %21 = dma.done [#allocation3], 1280
    $region9: #{tpu_custom_call.1} parent=1 // pred_fallthru
      _
    %v22 = vld [vmem:[#allocation2] sm:$0xff]
    %v23 = vld [vmem:[#allocation2 + $0x8] sm:$0xff]
    %v24 = vld [vmem:[#allocation2 + $0x10] sm:$0xff]
    %v25 = vld [vmem:[#allocation2 + $0x18] sm:$0xff]
    %v26 = vld [vmem:[#allocation2 + $0x20] sm:$0xff]
    %v27 = vld [vmem:[#allocation2 + $0x28] sm:$0xff]
    %v28 = vld [vmem:[#allocation2 + $0x30] sm:$0xff]
    %v29 = vld [vmem:[#allocation2 + $0x38] sm:$0xff]
    %v30 = vld [vmem:[#allocation2 + $0x40] sm:$0xff]
    %v31 = vld [vmem:[#allocation2 + $0x48] sm:$0x7]
    %v32 = vlaneseq
    %v33 = vand.u32 %v32, 127
    %vm34 = vcmask 261120
    %v35 = vsel %vm34, %v22, -inf
    %36 = vmax.xlane.f32.xlu0 %v35
    %v37 = vpop.xlane.xlu0 %36
    %v38 = vsel %vm34, %v23, -inf
    %39 = vmax.xlane.f32.xlu0 %v38
    %v40 = vpop.xlane.xlu0 %39
    %v41 = vsel %vm34, %v24, -inf
    %42 = vmax.xlane.f32.xlu0 %v41
    %v43 = vpop.xlane.xlu0 %42
    %v44 = vsel %vm34, %v25, -inf
    %45 = vmax.xlane.f32.xlu0 %v44
    %v46 = vpop.xlane.xlu0 %45
    %v47 = vsel %vm34, %v26, -inf
    %48 = vmax.xlane.f32.xlu0 %v47
    %v49 = vpop.xlane.xlu0 %48
    %v50 = vsel %vm34, %v27, -inf
    %51 = vmax.xlane.f32.xlu0 %v50
    %v52 = vpop.xlane.xlu0 %51
    %v53 = vsel %vm34, %v28, -inf
    %54 = vmax.xlane.f32.xlu0 %v53
    %v55 = vpop.xlane.xlu0 %54
    %v56 = vsel %vm34, %v29, -inf
    %57 = vmax.xlane.f32.xlu0 %v56
    %v58 = vpop.xlane.xlu0 %57
    %v59 = vsel %vm34, %v30, -inf
    %60 = vmax.xlane.f32.xlu0 %v59
    %v61 = vpop.xlane.xlu0 %60
    %vm62 = vcmask 256000
    %v63 = vsel %vm62, %v31, -inf
    %64 = vmax.xlane.f32.xlu0 %v63
    %v65 = vpop.xlane.xlu0 %64
    %vm66 = vcmp.eq.f32.partialorder %v22, %v37
    %vm67 = vcmp.eq.f32.partialorder %v23, %v40
    %vm68 = vcmp.eq.f32.partialorder %v24, %v43
    %vm69 = vcmp.eq.f32.partialorder %v25, %v46
    %vm70 = vcmp.eq.f32.partialorder %v26, %v49
    %vm71 = vcmp.eq.f32.partialorder %v27, %v52
    %vm72 = vcmp.eq.f32.partialorder %v28, %v55
    %vm73 = vcmp.eq.f32.partialorder %v29, %v58
    %vm74 = vcmp.eq.f32.partialorder %v30, %v61
    %vm75 = vcmp.eq.f32.partialorder %v31, %v65
    %v76 = vsel %vm66, %v33, 32
    %v77 = vsel %vm67, %v33, 32
    %v78 = vsel %vm68, %v33, 32
    %v79 = vsel %vm69, %v33, 32
    %v80 = vsel %vm70, %v33, 32
    %v81 = vsel %vm71, %v33, 32
    %v82 = vsel %vm72, %v33, 32
    %v83 = vsel %vm73, %v33, 32
    %v84 = vsel %vm74, %v33, 32
    %v85 = vsel %vm75, %v33, 32
    %v86 = vsel %vm34, %v76, 2147483647
    %v87 = vand.u32 %v86, 65535
    %v88 = vshra.s32 %v86, 16
    %v89 = vcvt.s32.f32 %v87
    %v90 = vcvt.s32.f32 %v88
    %91 = vmin.xlane.f32.xlu0 %v90
    %v92 = vpop.xlane.xlu0 %91
    %vm93 = vcmp.eq.f32.partialorder %v90, %v92
    %v94 = vsel %vm93, %v89, inf
    %95 = vmin.xlane.f32.xlu0 %v94
    %v96 = vpop.xlane.xlu0 %95
    %v97 = vcvt.f32.s32 %v96
    %v98 = vcvt.f32.s32 %v92
    %v99 = vshll.u32 %v98, 16
    %v100 = vadd.s32 %v99, %v97
    %v101 = vsel %vm34, %v77, 2147483647
    %v102 = vand.u32 %v101, 65535
    %v103 = vshra.s32 %v101, 16
    %v104 = vcvt.s32.f32 %v102
    %v105 = vcvt.s32.f32 %v103
    %106 = vmin.xlane.f32.xlu0 %v105
    %v107 = vpop.xlane.xlu0 %106
    %vm108 = vcmp.eq.f32.partialorder %v105, %v107
    %v109 = vsel %vm108, %v104, inf
    %110 = vmin.xlane.f32.xlu0 %v109
    %v111 = vpop.xlane.xlu0 %110
    %v112 = vcvt.f32.s32 %v111
    %v113 = vcvt.f32.s32 %v107
    %v114 = vshll.u32 %v113, 16
    %v115 = vadd.s32 %v114, %v112
    %v116 = vsel %vm34, %v78, 2147483647
    %v117 = vand.u32 %v116, 65535
    %v118 = vshra.s32 %v116, 16
    %v119 = vcvt.s32.f32 %v117
    %v120 = vcvt.s32.f32 %v118
    %121 = vmin.xlane.f32.xlu0 %v120
    %v122 = vpop.xlane.xlu0 %121
    %vm123 = vcmp.eq.f32.partialorder %v120, %v122
    %v124 = vsel %vm123, %v119, inf
    %125 = vmin.xlane.f32.xlu0 %v124
    %v126 = vpop.xlane.xlu0 %125
    %v127 = vcvt.f32.s32 %v126
    %v128 = vcvt.f32.s32 %v122
    %v129 = vshll.u32 %v128, 16
    %v130 = vadd.s32 %v129, %v127
    %v131 = vsel %vm34, %v79, 2147483647
    %v132 = vand.u32 %v131, 65535
    %v133 = vshra.s32 %v131, 16
    %v134 = vcvt.s32.f32 %v132
    %v135 = vcvt.s32.f32 %v133
    %136 = vmin.xlane.f32.xlu0 %v135
    %v137 = vpop.xlane.xlu0 %136
    %vm138 = vcmp.eq.f32.partialorder %v135, %v137
    %v139 = vsel %vm138, %v134, inf
    %140 = vmin.xlane.f32.xlu0 %v139
    %v141 = vpop.xlane.xlu0 %140
    %v142 = vcvt.f32.s32 %v141
    %v143 = vcvt.f32.s32 %v137
    %v144 = vshll.u32 %v143, 16
    %v145 = vadd.s32 %v144, %v142
    %v146 = vsel %vm34, %v80, 2147483647
    %v147 = vand.u32 %v146, 65535
    %v148 = vshra.s32 %v146, 16
    %v149 = vcvt.s32.f32 %v147
    %v150 = vcvt.s32.f32 %v148
    %151 = vmin.xlane.f32.xlu0 %v150
    %v152 = vpop.xlane.xlu0 %151
    %vm153 = vcmp.eq.f32.partialorder %v150, %v152
    %v154 = vsel %vm153, %v149, inf
    %155 = vmin.xlane.f32.xlu0 %v154
    %v156 = vpop.xlane.xlu0 %155
    %v157 = vcvt.f32.s32 %v156
    %v158 = vcvt.f32.s32 %v152
    %v159 = vshll.u32 %v158, 16
    %v160 = vadd.s32 %v159, %v157
    %v161 = vsel %vm34, %v81, 2147483647
    %v162 = vand.u32 %v161, 65535
    %v163 = vshra.s32 %v161, 16
    %v164 = vcvt.s32.f32 %v162
    %v165 = vcvt.s32.f32 %v163
    %166 = vmin.xlane.f32.xlu0 %v165
    %v167 = vpop.xlane.xlu0 %166
    %vm168 = vcmp.eq.f32.partialorder %v165, %v167
    %v169 = vsel %vm168, %v164, inf
    %170 = vmin.xlane.f32.xlu0 %v169
    %v171 = vpop.xlane.xlu0 %170
    %v172 = vcvt.f32.s32 %v171
    %v173 = vcvt.f32.s32 %v167
    %v174 = vshll.u32 %v173, 16
    %v175 = vadd.s32 %v174, %v172
    %v176 = vsel %vm34, %v82, 2147483647
    %v177 = vand.u32 %v176, 65535
    %v178 = vshra.s32 %v176, 16
    %v179 = vcvt.s32.f32 %v177
    %v180 = vcvt.s32.f32 %v178
    %181 = vmin.xlane.f32.xlu0 %v180
    %v182 = vpop.xlane.xlu0 %181
    %vm183 = vcmp.eq.f32.partialorder %v180, %v182
    %v184 = vsel %vm183, %v179, inf
    %185 = vmin.xlane.f32.xlu0 %v184
    %v186 = vpop.xlane.xlu0 %185
    %v187 = vcvt.f32.s32 %v186
    %v188 = vcvt.f32.s32 %v182
    %v189 = vshll.u32 %v188, 16
    %v190 = vadd.s32 %v189, %v187
    %v191 = vsel %vm34, %v83, 2147483647
    %v192 = vand.u32 %v191, 65535
    %v193 = vshra.s32 %v191, 16
    %v194 = vcvt.s32.f32 %v192
    %v195 = vcvt.s32.f32 %v193
    %196 = vmin.xlane.f32.xlu0 %v195
    %v197 = vpop.xlane.xlu0 %196
    %vm198 = vcmp.eq.f32.partialorder %v195, %v197
    %v199 = vsel %vm198, %v194, inf
    %200 = vmin.xlane.f32.xlu0 %v199
    %v201 = vpop.xlane.xlu0 %200
    %v202 = vcvt.f32.s32 %v201
    %v203 = vcvt.f32.s32 %v197
    %v204 = vshll.u32 %v203, 16
    %v205 = vadd.s32 %v204, %v202
    %v206 = vsel %vm34, %v84, 2147483647
    %v207 = vand.u32 %v206, 65535
    %v208 = vshra.s32 %v206, 16
    %v209 = vcvt.s32.f32 %v207
    %v210 = vcvt.s32.f32 %v208
    %211 = vmin.xlane.f32.xlu0 %v210
    %v212 = vpop.xlane.xlu0 %211
    %vm213 = vcmp.eq.f32.partialorder %v210, %v212
    %v214 = vsel %vm213, %v209, inf
    %215 = vmin.xlane.f32.xlu0 %v214
    %v216 = vpop.xlane.xlu0 %215
    %v217 = vcvt.f32.s32 %v216
    %v218 = vcvt.f32.s32 %v212
    %v219 = vshll.u32 %v218, 16
    %v220 = vadd.s32 %v219, %v217
    %v221 = vsel %vm62, %v85, 2147483647
    %v222 = vand.u32 %v221, 65535
    %v223 = vshra.s32 %v221, 16
    %v224 = vcvt.s32.f32 %v222
    %v225 = vcvt.s32.f32 %v223
    %226 = vmin.xlane.f32.xlu0 %v225
    %v227 = vpop.xlane.xlu0 %226
    %vm228 = vcmp.eq.f32.partialorder %v225, %v227
    %v229 = vsel %vm228, %v224, inf
    %230 = vmin.xlane.f32.xlu0 %v229
    %v231 = vpop.xlane.xlu0 %230
    %v232 = vcvt.f32.s32 %v231
    %v233 = vcvt.f32.s32 %v227
    %v234 = vshll.u32 %v233, 16
    %v235 = vadd.s32 %v234, %v232
    %vm236 = vcmp.lt.s32.totalorder %v100, 31
    %v237 = vsel %vm236, %v100, 31
    %vm238 = vcmp.lt.s32.totalorder %v115, 31
    %v239 = vsel %vm238, %v115, 31
    %vm240 = vcmp.lt.s32.totalorder %v130, 31
    %v241 = vsel %vm240, %v130, 31
    %vm242 = vcmp.lt.s32.totalorder %v145, 31
    %v243 = vsel %vm242, %v145, 31
    %vm244 = vcmp.lt.s32.totalorder %v160, 31
    %v245 = vsel %vm244, %v160, 31
    %vm246 = vcmp.lt.s32.totalorder %v175, 31
    %v247 = vsel %vm246, %v175, 31
    %vm248 = vcmp.lt.s32.totalorder %v190, 31
    %v249 = vsel %vm248, %v190, 31
    %vm250 = vcmp.lt.s32.totalorder %v205, 31
    %v251 = vsel %vm250, %v205, 31
    %vm252 = vcmp.lt.s32.totalorder %v220, 31
    %v253 = vsel %vm252, %v220, 31
    %vm254 = vcmp.lt.s32.totalorder %v235, 31
    %v255 = vsel %vm254, %v235, 31
    %vm256 = vcmask 523520
    %v257 = vsel %vm256, %v22, -inf
    %258 = vmax.xlane.f32.xlu0 %v257
    %v259 = vpop.xlane.xlu0 %258
    %v260 = vsel %vm256, %v23, -inf
    %261 = vmax.xlane.f32.xlu0 %v260
    %v262 = vpop.xlane.xlu0 %261
    %v263 = vsel %vm256, %v24, -inf
    %264 = vmax.xlane.f32.xlu0 %v263
    %v265 = vpop.xlane.xlu0 %264
    %v266 = vsel %vm256, %v25, -inf
    %267 = vmax.xlane.f32.xlu0 %v266
    %v268 = vpop.xlane.xlu0 %267
    %v269 = vsel %vm256, %v26, -inf
    %270 = vmax.xlane.f32.xlu0 %v269
    %v271 = vpop.xlane.xlu0 %270
    %v272 = vsel %vm256, %v27, -inf
    %273 = vmax.xlane.f32.xlu0 %v272
    %v274 = vpop.xlane.xlu0 %273
    %v275 = vsel %vm256, %v28, -inf
    %276 = vmax.xlane.f32.xlu0 %v275
    %v277 = vpop.xlane.xlu0 %276
    %v278 = vsel %vm256, %v29, -inf
    %279 = vmax.xlane.f32.xlu0 %v278
    %v280 = vpop.xlane.xlu0 %279
    %v281 = vsel %vm256, %v30, -inf
    %282 = vmax.xlane.f32.xlu0 %v281
    %v283 = vpop.xlane.xlu0 %282
    %vm284 = vcmask 518400
    %v285 = vsel %vm284, %v31, -inf
    %286 = vmax.xlane.f32.xlu0 %v285
    %v287 = vpop.xlane.xlu0 %286
    %vm288 = vcmp.eq.f32.partialorder %v22, %v259
    %vm289 = vcmp.eq.f32.partialorder %v23, %v262
    %vm290 = vcmp.eq.f32.partialorder %v24, %v265
    %vm291 = vcmp.eq.f32.partialorder %v25, %v268
    %vm292 = vcmp.eq.f32.partialorder %v26, %v271
    %vm293 = vcmp.eq.f32.partialorder %v27, %v274
    %vm294 = vcmp.eq.f32.partialorder %v28, %v277
    %vm295 = vcmp.eq.f32.partialorder %v29, %v280
    %vm296 = vcmp.eq.f32.partialorder %v30, %v283
    %vm297 = vcmp.eq.f32.partialorder %v31, %v287
    %298 = vrot.lane.b32.xlu0 %v33, 32
    %v299 = vpop.permute.xlu0 %298
    %v300 = vsel %vm288, %v299, 32
    %v301 = vsel %vm289, %v299, 32
    %v302 = vsel %vm290, %v299, 32
    %v303 = vsel %vm291, %v299, 32
    %v304 = vsel %vm292, %v299, 32
    %v305 = vsel %vm293, %v299, 32
    %v306 = vsel %vm294, %v299, 32
    %v307 = vsel %vm295, %v299, 32
    %v308 = vsel %vm296, %v299, 32
    %v309 = vsel %vm297, %v299, 32
    %v310 = vsel %vm256, %v300, 2147483647
    %v311 = vand.u32 %v310, 65535
    %v312 = vshra.s32 %v310, 16
    %v313 = vcvt.s32.f32 %v311
    %v314 = vcvt.s32.f32 %v312
    %315 = vmin.xlane.f32.xlu0 %v314
    %v316 = vpop.xlane.xlu0 %315
    %vm317 = vcmp.eq.f32.partialorder %v314, %v316
    %v318 = vsel %vm317, %v313, inf
    %319 = vmin.xlane.f32.xlu0 %v318
    %v320 = vpop.xlane.xlu0 %319
    %v321 = vcvt.f32.s32 %v320
    %v322 = vcvt.f32.s32 %v316
    %v323 = vshll.u32 %v322, 16
    %v324 = vadd.s32 %v323, %v321
    %v325 = vsel %vm256, %v301, 2147483647
    %v326 = vand.u32 %v325, 65535
    %v327 = vshra.s32 %v325, 16
    %v328 = vcvt.s32.f32 %v326
    %v329 = vcvt.s32.f32 %v327
    %330 = vmin.xlane.f32.xlu0 %v329
    %v331 = vpop.xlane.xlu0 %330
    %vm332 = vcmp.eq.f32.partialorder %v329, %v331
    %v333 = vsel %vm332, %v328, inf
    %334 = vmin.xlane.f32.xlu0 %v333
    %v335 = vpop.xlane.xlu0 %334
    %v336 = vcvt.f32.s32 %v335
    %v337 = vcvt.f32.s32 %v331
    %v338 = vshll.u32 %v337, 16
    %v339 = vadd.s32 %v338, %v336
    %v340 = vsel %vm256, %v302, 2147483647
    %v341 = vand.u32 %v340, 65535
    %v342 = vshra.s32 %v340, 16
    %v343 = vcvt.s32.f32 %v341
    %v344 = vcvt.s32.f32 %v342
    %345 = vmin.xlane.f32.xlu0 %v344
    %v346 = vpop.xlane.xlu0 %345
    %vm347 = vcmp.eq.f32.partialorder %v344, %v346
    %v348 = vsel %vm347, %v343, inf
    %349 = vmin.xlane.f32.xlu0 %v348
    %v350 = vpop.xlane.xlu0 %349
    %v351 = vcvt.f32.s32 %v350
    %v352 = vcvt.f32.s32 %v346
    %v353 = vshll.u32 %v352, 16
    %v354 = vadd.s32 %v353, %v351
    %v355 = vsel %vm256, %v303, 2147483647
    %v356 = vand.u32 %v355, 65535
    %v357 = vshra.s32 %v355, 16
    %v358 = vcvt.s32.f32 %v356
    %v359 = vcvt.s32.f32 %v357
    %360 = vmin.xlane.f32.xlu0 %v359
    %v361 = vpop.xlane.xlu0 %360
    %vm362 = vcmp.eq.f32.partialorder %v359, %v361
    %v363 = vsel %vm362, %v358, inf
    %364 = vmin.xlane.f32.xlu0 %v363
    %v365 = vpop.xlane.xlu0 %364
    %v366 = vcvt.f32.s32 %v365
    %v367 = vcvt.f32.s32 %v361
    %v368 = vshll.u32 %v367, 16
    %v369 = vadd.s32 %v368, %v366
    %v370 = vsel %vm256, %v304, 2147483647
    %v371 = vand.u32 %v370, 65535
    %v372 = vshra.s32 %v370, 16
    %v373 = vcvt.s32.f32 %v371
    %v374 = vcvt.s32.f32 %v372
    %375 = vmin.xlane.f32.xlu0 %v374
    %v376 = vpop.xlane.xlu0 %375
    %vm377 = vcmp.eq.f32.partialorder %v374, %v376
    %v378 = vsel %vm377, %v373, inf
    %379 = vmin.xlane.f32.xlu0 %v378
    %v380 = vpop.xlane.xlu0 %379
    %v381 = vcvt.f32.s32 %v380
    %v382 = vcvt.f32.s32 %v376
    %v383 = vshll.u32 %v382, 16
    %v384 = vadd.s32 %v383, %v381
    %v385 = vsel %vm256, %v305, 2147483647
    %v386 = vand.u32 %v385, 65535
    %v387 = vshra.s32 %v385, 16
    %v388 = vcvt.s32.f32 %v386
    %v389 = vcvt.s32.f32 %v387
    %390 = vmin.xlane.f32.xlu0 %v389
    %v391 = vpop.xlane.xlu0 %390
    %vm392 = vcmp.eq.f32.partialorder %v389, %v391
    %v393 = vsel %vm392, %v388, inf
    %394 = vmin.xlane.f32.xlu0 %v393
    %v395 = vpop.xlane.xlu0 %394
    %v396 = vcvt.f32.s32 %v395
    %v397 = vcvt.f32.s32 %v391
    %v398 = vshll.u32 %v397, 16
    %v399 = vadd.s32 %v398, %v396
    %v400 = vsel %vm256, %v306, 2147483647
    %v401 = vand.u32 %v400, 65535
    %v402 = vshra.s32 %v400, 16
    %v403 = vcvt.s32.f32 %v401
    %v404 = vcvt.s32.f32 %v402
    %405 = vmin.xlane.f32.xlu0 %v404
    %v406 = vpop.xlane.xlu0 %405
    %vm407 = vcmp.eq.f32.partialorder %v404, %v406
    %v408 = vsel %vm407, %v403, inf
    %409 = vmin.xlane.f32.xlu0 %v408
    %v410 = vpop.xlane.xlu0 %409
    %v411 = vcvt.f32.s32 %v410
    %v412 = vcvt.f32.s32 %v406
    %v413 = vshll.u32 %v412, 16
    %v414 = vadd.s32 %v413, %v411
    %v415 = vsel %vm256, %v307, 2147483647
    %v416 = vand.u32 %v415, 65535
    %v417 = vshra.s32 %v415, 16
    %v418 = vcvt.s32.f32 %v416
    %v419 = vcvt.s32.f32 %v417
    %420 = vmin.xlane.f32.xlu0 %v419
    %v421 = vpop.xlane.xlu0 %420
    %vm422 = vcmp.eq.f32.partialorder %v419, %v421
    %v423 = vsel %vm422, %v418, inf
    %424 = vmin.xlane.f32.xlu0 %v423
    %v425 = vpop.xlane.xlu0 %424
    %v426 = vcvt.f32.s32 %v425
    %v427 = vcvt.f32.s32 %v421
    %v428 = vshll.u32 %v427, 16
    %v429 = vadd.s32 %v428, %v426
    %v430 = vsel %vm256, %v308, 2147483647
    %v431 = vand.u32 %v430, 65535
    %v432 = vshra.s32 %v430, 16
    %v433 = vcvt.s32.f32 %v431
    %v434 = vcvt.s32.f32 %v432
    %435 = vmin.xlane.f32.xlu0 %v434
    %v436 = vpop.xlane.xlu0 %435
    %vm437 = vcmp.eq.f32.partialorder %v434, %v436
    %v438 = vsel %vm437, %v433, inf
    %439 = vmin.xlane.f32.xlu0 %v438
    %v440 = vpop.xlane.xlu0 %439
    %v441 = vcvt.f32.s32 %v440
    %v442 = vcvt.f32.s32 %v436
    %v443 = vshll.u32 %v442, 16
    %v444 = vadd.s32 %v443, %v441
    %v445 = vsel %vm284, %v309, 2147483647
    %v446 = vand.u32 %v445, 65535
    %v447 = vshra.s32 %v445, 16
    %v448 = vcvt.s32.f32 %v446
    %v449 = vcvt.s32.f32 %v447
    %450 = vmin.xlane.f32.xlu0 %v449
    %v451 = vpop.xlane.xlu0 %450
    %vm452 = vcmp.eq.f32.partialorder %v449, %v451
    %v453 = vsel %vm452, %v448, inf
    %454 = vmin.xlane.f32.xlu0 %v453
    %v455 = vpop.xlane.xlu0 %454
    %v456 = vcvt.f32.s32 %v455
    %v457 = vcvt.f32.s32 %v451
    %v458 = vshll.u32 %v457, 16
    %v459 = vadd.s32 %v458, %v456
    %vm460 = vcmp.lt.s32.totalorder %v324, 31
    %v461 = vsel %vm460, %v324, 31
    %vm462 = vcmp.lt.s32.totalorder %v339, 31
    %v463 = vsel %vm462, %v339, 31
    %vm464 = vcmp.lt.s32.totalorder %v354, 31
    %v465 = vsel %vm464, %v354, 31
    %vm466 = vcmp.lt.s32.totalorder %v369, 31
    %v467 = vsel %vm466, %v369, 31
    %vm468 = vcmp.lt.s32.totalorder %v384, 31
    %v469 = vsel %vm468, %v384, 31
    %vm470 = vcmp.lt.s32.totalorder %v399, 31
    %v471 = vsel %vm470, %v399, 31
    %vm472 = vcmp.lt.s32.totalorder %v414, 31
    %v473 = vsel %vm472, %v414, 31
    %vm474 = vcmp.lt.s32.totalorder %v429, 31
    %v475 = vsel %vm474, %v429, 31
    %vm476 = vcmp.lt.s32.totalorder %v444, 31
    %v477 = vsel %vm476, %v444, 31
    %vm478 = vcmp.lt.s32.totalorder %v459, 31
    %v479 = vsel %vm478, %v459, 31
    %vm480 = vcmask 785920
    %v481 = vsel %vm480, %v22, -inf
    %482 = vmax.xlane.f32.xlu0 %v481
    %v483 = vpop.xlane.xlu0 %482
    %v484 = vsel %vm480, %v23, -inf
    %485 = vmax.xlane.f32.xlu0 %v484
    %v486 = vpop.xlane.xlu0 %485
    %v487 = vsel %vm480, %v24, -inf
    %488 = vmax.xlane.f32.xlu0 %v487
    %v489 = vpop.xlane.xlu0 %488
    %v490 = vsel %vm480, %v25, -inf
    %491 = vmax.xlane.f32.xlu0 %v490
    %v492 = vpop.xlane.xlu0 %491
    %v493 = vsel %vm480, %v26, -inf
    %494 = vmax.xlane.f32.xlu0 %v493
    %v495 = vpop.xlane.xlu0 %494
    %v496 = vsel %vm480, %v27, -inf
    %497 = vmax.xlane.f32.xlu0 %v496
    %v498 = vpop.xlane.xlu0 %497
    %v499 = vsel %vm480, %v28, -inf
    %500 = vmax.xlane.f32.xlu0 %v499
    %v501 = vpop.xlane.xlu0 %500
    %v502 = vsel %vm480, %v29, -inf
    %503 = vmax.xlane.f32.xlu0 %v502
    %v504 = vpop.xlane.xlu0 %503
    %v505 = vsel %vm480, %v30, -inf
    %506 = vmax.xlane.f32.xlu0 %v505
    %v507 = vpop.xlane.xlu0 %506
    %vm508 = vcmask 780800
    %v509 = vsel %vm508, %v31, -inf
    %510 = vmax.xlane.f32.xlu0 %v509
    %v511 = vpop.xlane.xlu0 %510
    %vm512 = vcmp.eq.f32.partialorder %v22, %v483
    %vm513 = vcmp.eq.f32.partialorder %v23, %v486
    %vm514 = vcmp.eq.f32.partialorder %v24, %v489
    %vm515 = vcmp.eq.f32.partialorder %v25, %v492
    %vm516 = vcmp.eq.f32.partialorder %v26, %v495
    %vm517 = vcmp.eq.f32.partialorder %v27, %v498
    %vm518 = vcmp.eq.f32.partialorder %v28, %v501
    %vm519 = vcmp.eq.f32.partialorder %v29, %v504
    %vm520 = vcmp.eq.f32.partialorder %v30, %v507
    %vm521 = vcmp.eq.f32.partialorder %v31, %v511
    %522 = vrot.lane.b32.xlu0 %v33, 64
    %v523 = vpop.permute.xlu0 %522
    %v524 = vsel %vm512, %v523, 32
    %v525 = vsel %vm513, %v523, 32
    %v526 = vsel %vm514, %v523, 32
    %v527 = vsel %vm515, %v523, 32
    %v528 = vsel %vm516, %v523, 32
    %v529 = vsel %vm517, %v523, 32
    %v530 = vsel %vm518, %v523, 32
    %v531 = vsel %vm519, %v523, 32
    %v532 = vsel %vm520, %v523, 32
    %v533 = vsel %vm521, %v523, 32
    %v534 = vsel %vm480, %v524, 2147483647
    %v535 = vand.u32 %v534, 65535
    %v536 = vshra.s32 %v534, 16
    %v537 = vcvt.s32.f32 %v535
    %v538 = vcvt.s32.f32 %v536
    %539 = vmin.xlane.f32.xlu0 %v538
    %v540 = vpop.xlane.xlu0 %539
    %vm541 = vcmp.eq.f32.partialorder %v538, %v540
    %v542 = vsel %vm541, %v537, inf
    %543 = vmin.xlane.f32.xlu0 %v542
    %v544 = vpop.xlane.xlu0 %543
    %v545 = vcvt.f32.s32 %v544
    %v546 = vcvt.f32.s32 %v540
    %v547 = vshll.u32 %v546, 16
    %v548 = vadd.s32 %v547, %v545
    %v549 = vsel %vm480, %v525, 2147483647
    %v550 = vand.u32 %v549, 65535
    %v551 = vshra.s32 %v549, 16
    %v552 = vcvt.s32.f32 %v550
    %v553 = vcvt.s32.f32 %v551
    %554 = vmin.xlane.f32.xlu0 %v553
    %v555 = vpop.xlane.xlu0 %554
    %vm556 = vcmp.eq.f32.partialorder %v553, %v555
    %v557 = vsel %vm556, %v552, inf
    %558 = vmin.xlane.f32.xlu0 %v557
    %v559 = vpop.xlane.xlu0 %558
    %v560 = vcvt.f32.s32 %v559
    %v561 = vcvt.f32.s32 %v555
    %v562 = vshll.u32 %v561, 16
    %v563 = vadd.s32 %v562, %v560
    %v564 = vsel %vm480, %v526, 2147483647
    %v565 = vand.u32 %v564, 65535
    %v566 = vshra.s32 %v564, 16
    %v567 = vcvt.s32.f32 %v565
    %v568 = vcvt.s32.f32 %v566
    %569 = vmin.xlane.f32.xlu0 %v568
    %v570 = vpop.xlane.xlu0 %569
    %vm571 = vcmp.eq.f32.partialorder %v568, %v570
    %v572 = vsel %vm571, %v567, inf
    %573 = vmin.xlane.f32.xlu0 %v572
    %v574 = vpop.xlane.xlu0 %573
    %v575 = vcvt.f32.s32 %v574
    %v576 = vcvt.f32.s32 %v570
    %v577 = vshll.u32 %v576, 16
    %v578 = vadd.s32 %v577, %v575
    %v579 = vsel %vm480, %v527, 2147483647
    %v580 = vand.u32 %v579, 65535
    %v581 = vshra.s32 %v579, 16
    %v582 = vcvt.s32.f32 %v580
    %v583 = vcvt.s32.f32 %v581
    %584 = vmin.xlane.f32.xlu0 %v583
    %v585 = vpop.xlane.xlu0 %584
    %vm586 = vcmp.eq.f32.partialorder %v583, %v585
    %v587 = vsel %vm586, %v582, inf
    %588 = vmin.xlane.f32.xlu0 %v587
    %v589 = vpop.xlane.xlu0 %588
    %v590 = vcvt.f32.s32 %v589
    %v591 = vcvt.f32.s32 %v585
    %v592 = vshll.u32 %v591, 16
    %v593 = vadd.s32 %v592, %v590
    %v594 = vsel %vm480, %v528, 2147483647
    %v595 = vand.u32 %v594, 65535
    %v596 = vshra.s32 %v594, 16
    %v597 = vcvt.s32.f32 %v595
    %v598 = vcvt.s32.f32 %v596
    %599 = vmin.xlane.f32.xlu0 %v598
    %v600 = vpop.xlane.xlu0 %599
    %vm601 = vcmp.eq.f32.partialorder %v598, %v600
    %v602 = vsel %vm601, %v597, inf
    %603 = vmin.xlane.f32.xlu0 %v602
    %v604 = vpop.xlane.xlu0 %603
    %v605 = vcvt.f32.s32 %v604
    %v606 = vcvt.f32.s32 %v600
    %v607 = vshll.u32 %v606, 16
    %v608 = vadd.s32 %v607, %v605
    %v609 = vsel %vm480, %v529, 2147483647
    %v610 = vand.u32 %v609, 65535
    %v611 = vshra.s32 %v609, 16
    %v612 = vcvt.s32.f32 %v610
    %v613 = vcvt.s32.f32 %v611
    %614 = vmin.xlane.f32.xlu0 %v613
    %v615 = vpop.xlane.xlu0 %614
    %vm616 = vcmp.eq.f32.partialorder %v613, %v615
    %v617 = vsel %vm616, %v612, inf
    %618 = vmin.xlane.f32.xlu0 %v617
    %v619 = vpop.xlane.xlu0 %618
    %v620 = vcvt.f32.s32 %v619
    %v621 = vcvt.f32.s32 %v615
    %v622 = vshll.u32 %v621, 16
    %v623 = vadd.s32 %v622, %v620
    %v624 = vsel %vm480, %v530, 2147483647
    %v625 = vand.u32 %v624, 65535
    %v626 = vshra.s32 %v624, 16
    %v627 = vcvt.s32.f32 %v625
    %v628 = vcvt.s32.f32 %v626
    %629 = vmin.xlane.f32.xlu0 %v628
    %v630 = vpop.xlane.xlu0 %629
    %vm631 = vcmp.eq.f32.partialorder %v628, %v630
    %v632 = vsel %vm631, %v627, inf
    %633 = vmin.xlane.f32.xlu0 %v632
    %v634 = vpop.xlane.xlu0 %633
    %v635 = vcvt.f32.s32 %v634
    %v636 = vcvt.f32.s32 %v630
    %v637 = vshll.u32 %v636, 16
    %v638 = vadd.s32 %v637, %v635
    %v639 = vsel %vm480, %v531, 2147483647
    %v640 = vand.u32 %v639, 65535
    %v641 = vshra.s32 %v639, 16
    %v642 = vcvt.s32.f32 %v640
    %v643 = vcvt.s32.f32 %v641
    %644 = vmin.xlane.f32.xlu0 %v643
    %v645 = vpop.xlane.xlu0 %644
    %vm646 = vcmp.eq.f32.partialorder %v643, %v645
    %v647 = vsel %vm646, %v642, inf
    %648 = vmin.xlane.f32.xlu0 %v647
    %v649 = vpop.xlane.xlu0 %648
    %v650 = vcvt.f32.s32 %v649
    %v651 = vcvt.f32.s32 %v645
    %v652 = vshll.u32 %v651, 16
    %v653 = vadd.s32 %v652, %v650
    %v654 = vsel %vm480, %v532, 2147483647
    %v655 = vand.u32 %v654, 65535
    %v656 = vshra.s32 %v654, 16
    %v657 = vcvt.s32.f32 %v655
    %v658 = vcvt.s32.f32 %v656
    %659 = vmin.xlane.f32.xlu0 %v658
    %v660 = vpop.xlane.xlu0 %659
    %vm661 = vcmp.eq.f32.partialorder %v658, %v660
    %v662 = vsel %vm661, %v657, inf
    %663 = vmin.xlane.f32.xlu0 %v662
    %v664 = vpop.xlane.xlu0 %663
    %v665 = vcvt.f32.s32 %v664
    %v666 = vcvt.f32.s32 %v660
    %v667 = vshll.u32 %v666, 16
    %v668 = vadd.s32 %v667, %v665
    %v669 = vsel %vm508, %v533, 2147483647
    %v670 = vand.u32 %v669, 65535
    %v671 = vshra.s32 %v669, 16
    %v672 = vcvt.s32.f32 %v670
    %v673 = vcvt.s32.f32 %v671
    %674 = vmin.xlane.f32.xlu0 %v673
    %v675 = vpop.xlane.xlu0 %674
    %vm676 = vcmp.eq.f32.partialorder %v673, %v675
    %v677 = vsel %vm676, %v672, inf
    %678 = vmin.xlane.f32.xlu0 %v677
    %v679 = vpop.xlane.xlu0 %678
    %v680 = vcvt.f32.s32 %v679
    %v681 = vcvt.f32.s32 %v675
    %v682 = vshll.u32 %v681, 16
    %v683 = vadd.s32 %v682, %v680
    %vm684 = vcmp.lt.s32.totalorder %v548, 31
    %v685 = vsel %vm684, %v548, 31
    %vm686 = vcmp.lt.s32.totalorder %v563, 31
    %v687 = vsel %vm686, %v563, 31
    %vm688 = vcmp.lt.s32.totalorder %v578, 31
    %v689 = vsel %vm688, %v578, 31
    %vm690 = vcmp.lt.s32.totalorder %v593, 31
    %v691 = vsel %vm690, %v593, 31
    %vm692 = vcmp.lt.s32.totalorder %v608, 31
    %v693 = vsel %vm692, %v608, 31
    %vm694 = vcmp.lt.s32.totalorder %v623, 31
    %v695 = vsel %vm694, %v623, 31
    %vm696 = vcmp.lt.s32.totalorder %v638, 31
    %v697 = vsel %vm696, %v638, 31
    %vm698 = vcmp.lt.s32.totalorder %v653, 31
    %v699 = vsel %vm698, %v653, 31
    %vm700 = vcmp.lt.s32.totalorder %v668, 31
    %v701 = vsel %vm700, %v668, 31
    %vm702 = vcmp.lt.s32.totalorder %v683, 31
    %v703 = vsel %vm702, %v683, 31
    %vm704 = vcmask 1048320
    %v705 = vsel %vm704, %v22, -inf
    %706 = vmax.xlane.f32.xlu0 %v705
    %v707 = vpop.xlane.xlu0 %706
    %v708 = vsel %vm704, %v23, -inf
    %709 = vmax.xlane.f32.xlu0 %v708
    %v710 = vpop.xlane.xlu0 %709
    %v711 = vsel %vm704, %v24, -inf
    %712 = vmax.xlane.f32.xlu0 %v711
    %v713 = vpop.xlane.xlu0 %712
    %v714 = vsel %vm704, %v25, -inf
    %715 = vmax.xlane.f32.xlu0 %v714
    %v716 = vpop.xlane.xlu0 %715
    %v717 = vsel %vm704, %v26, -inf
    %718 = vmax.xlane.f32.xlu0 %v717
    %v719 = vpop.xlane.xlu0 %718
    %v720 = vsel %vm704, %v27, -inf
    %721 = vmax.xlane.f32.xlu0 %v720
    %v722 = vpop.xlane.xlu0 %721
    %v723 = vsel %vm704, %v28, -inf
    %724 = vmax.xlane.f32.xlu0 %v723
    %v725 = vpop.xlane.xlu0 %724
    %v726 = vsel %vm704, %v29, -inf
    %727 = vmax.xlane.f32.xlu0 %v726
    %v728 = vpop.xlane.xlu0 %727
    %v729 = vsel %vm704, %v30, -inf
    %730 = vmax.xlane.f32.xlu0 %v729
    %v731 = vpop.xlane.xlu0 %730
    %vm732 = vcmask 1043200
    %v733 = vsel %vm732, %v31, -inf
    %734 = vmax.xlane.f32.xlu0 %v733
    %v735 = vpop.xlane.xlu0 %734
    %vm736 = vcmp.eq.f32.partialorder %v22, %v707
    %vm737 = vcmp.eq.f32.partialorder %v23, %v710
    %vm738 = vcmp.eq.f32.partialorder %v24, %v713
    %vm739 = vcmp.eq.f32.partialorder %v25, %v716
    %vm740 = vcmp.eq.f32.partialorder %v26, %v719
    %vm741 = vcmp.eq.f32.partialorder %v27, %v722
    %vm742 = vcmp.eq.f32.partialorder %v28, %v725
    %vm743 = vcmp.eq.f32.partialorder %v29, %v728
    %vm744 = vcmp.eq.f32.partialorder %v30, %v731
    %vm745 = vcmp.eq.f32.partialorder %v31, %v735
    %746 = vrot.lane.b32.xlu0 %v33, 96
    %v747 = vpop.permute.xlu0 %746
    %v748 = vsel %vm736, %v747, 32
    %v749 = vsel %vm737, %v747, 32
    %v750 = vsel %vm738, %v747, 32
    %v751 = vsel %vm739, %v747, 32
    %v752 = vsel %vm740, %v747, 32
    %v753 = vsel %vm741, %v747, 32
    %v754 = vsel %vm742, %v747, 32
    %v755 = vsel %vm743, %v747, 32
    %v756 = vsel %vm744, %v747, 32
    %v757 = vsel %vm745, %v747, 32
    %v758 = vsel %vm704, %v748, 2147483647
    %v759 = vand.u32 %v758, 65535
    %v760 = vshra.s32 %v758, 16
    %v761 = vcvt.s32.f32 %v759
    %v762 = vcvt.s32.f32 %v760
    %763 = vmin.xlane.f32.xlu0 %v762
    %v764 = vpop.xlane.xlu0 %763
    %vm765 = vcmp.eq.f32.partialorder %v762, %v764
    %v766 = vsel %vm765, %v761, inf
    %767 = vmin.xlane.f32.xlu0 %v766
    %v768 = vpop.xlane.xlu0 %767
    %v769 = vcvt.f32.s32 %v768
    %v770 = vcvt.f32.s32 %v764
    %v771 = vshll.u32 %v770, 16
    %v772 = vadd.s32 %v771, %v769
    %v773 = vsel %vm704, %v749, 2147483647
    %v774 = vand.u32 %v773, 65535
    %v775 = vshra.s32 %v773, 16
    %v776 = vcvt.s32.f32 %v774
    %v777 = vcvt.s32.f32 %v775
    %778 = vmin.xlane.f32.xlu0 %v777
    %v779 = vpop.xlane.xlu0 %778
    %vm780 = vcmp.eq.f32.partialorder %v777, %v779
    %v781 = vsel %vm780, %v776, inf
    %782 = vmin.xlane.f32.xlu0 %v781
    %v783 = vpop.xlane.xlu0 %782
    %v784 = vcvt.f32.s32 %v783
    %v785 = vcvt.f32.s32 %v779
    %v786 = vshll.u32 %v785, 16
    %v787 = vadd.s32 %v786, %v784
    %v788 = vsel %vm704, %v750, 2147483647
    %v789 = vand.u32 %v788, 65535
    %v790 = vshra.s32 %v788, 16
    %v791 = vcvt.s32.f32 %v789
    %v792 = vcvt.s32.f32 %v790
    %793 = vmin.xlane.f32.xlu0 %v792
    %v794 = vpop.xlane.xlu0 %793
    %vm795 = vcmp.eq.f32.partialorder %v792, %v794
    %v796 = vsel %vm795, %v791, inf
    %797 = vmin.xlane.f32.xlu0 %v796
    %v798 = vpop.xlane.xlu0 %797
    %v799 = vcvt.f32.s32 %v798
    %v800 = vcvt.f32.s32 %v794
    %v801 = vshll.u32 %v800, 16
    %v802 = vadd.s32 %v801, %v799
    %v803 = vsel %vm704, %v751, 2147483647
    %v804 = vand.u32 %v803, 65535
    %v805 = vshra.s32 %v803, 16
    %v806 = vcvt.s32.f32 %v804
    %v807 = vcvt.s32.f32 %v805
    %808 = vmin.xlane.f32.xlu0 %v807
    %v809 = vpop.xlane.xlu0 %808
    %vm810 = vcmp.eq.f32.partialorder %v807, %v809
    %v811 = vsel %vm810, %v806, inf
    %812 = vmin.xlane.f32.xlu0 %v811
    %v813 = vpop.xlane.xlu0 %812
    %v814 = vcvt.f32.s32 %v813
    %v815 = vcvt.f32.s32 %v809
    %v816 = vshll.u32 %v815, 16
    %v817 = vadd.s32 %v816, %v814
    %v818 = vsel %vm704, %v752, 2147483647
    %v819 = vand.u32 %v818, 65535
    %v820 = vshra.s32 %v818, 16
    %v821 = vcvt.s32.f32 %v819
    %v822 = vcvt.s32.f32 %v820
    %823 = vmin.xlane.f32.xlu0 %v822
    %v824 = vpop.xlane.xlu0 %823
    %vm825 = vcmp.eq.f32.partialorder %v822, %v824
    %v826 = vsel %vm825, %v821, inf
    %827 = vmin.xlane.f32.xlu0 %v826
    %v828 = vpop.xlane.xlu0 %827
    %v829 = vcvt.f32.s32 %v828
    %v830 = vcvt.f32.s32 %v824
    %v831 = vshll.u32 %v830, 16
    %v832 = vadd.s32 %v831, %v829
    %v833 = vsel %vm704, %v753, 2147483647
    %v834 = vand.u32 %v833, 65535
    %v835 = vshra.s32 %v833, 16
    %v836 = vcvt.s32.f32 %v834
    %v837 = vcvt.s32.f32 %v835
    %838 = vmin.xlane.f32.xlu0 %v837
    %v839 = vpop.xlane.xlu0 %838
    %vm840 = vcmp.eq.f32.partialorder %v837, %v839
    %v841 = vsel %vm840, %v836, inf
    %842 = vmin.xlane.f32.xlu0 %v841
    %v843 = vpop.xlane.xlu0 %842
    %v844 = vcvt.f32.s32 %v843
    %v845 = vcvt.f32.s32 %v839
    %v846 = vshll.u32 %v845, 16
    %v847 = vadd.s32 %v846, %v844
    %v848 = vsel %vm704, %v754, 2147483647
    %v849 = vand.u32 %v848, 65535
    %v850 = vshra.s32 %v848, 16
    %v851 = vcvt.s32.f32 %v849
    %v852 = vcvt.s32.f32 %v850
    %853 = vmin.xlane.f32.xlu0 %v852
    %v854 = vpop.xlane.xlu0 %853
    %vm855 = vcmp.eq.f32.partialorder %v852, %v854
    %v856 = vsel %vm855, %v851, inf
    %857 = vmin.xlane.f32.xlu0 %v856
    %v858 = vpop.xlane.xlu0 %857
    %v859 = vcvt.f32.s32 %v858
    %v860 = vcvt.f32.s32 %v854
    %v861 = vshll.u32 %v860, 16
    %v862 = vadd.s32 %v861, %v859
    %v863 = vsel %vm704, %v755, 2147483647
    %v864 = vand.u32 %v863, 65535
    %v865 = vshra.s32 %v863, 16
    %v866 = vcvt.s32.f32 %v864
    %v867 = vcvt.s32.f32 %v865
    %868 = vmin.xlane.f32.xlu0 %v867
    %v869 = vpop.xlane.xlu0 %868
    %vm870 = vcmp.eq.f32.partialorder %v867, %v869
    %v871 = vsel %vm870, %v866, inf
    %872 = vmin.xlane.f32.xlu0 %v871
    %v873 = vpop.xlane.xlu0 %872
    %v874 = vcvt.f32.s32 %v873
    %v875 = vcvt.f32.s32 %v869
    %v876 = vshll.u32 %v875, 16
    %v877 = vadd.s32 %v876, %v874
    %v878 = vsel %vm704, %v756, 2147483647
    %v879 = vand.u32 %v878, 65535
    %v880 = vshra.s32 %v878, 16
    %v881 = vcvt.s32.f32 %v879
    %v882 = vcvt.s32.f32 %v880
    %883 = vmin.xlane.f32.xlu0 %v882
    %v884 = vpop.xlane.xlu0 %883
    %vm885 = vcmp.eq.f32.partialorder %v882, %v884
    %v886 = vsel %vm885, %v881, inf
    %887 = vmin.xlane.f32.xlu0 %v886
    %v888 = vpop.xlane.xlu0 %887
    %v889 = vcvt.f32.s32 %v888
    %v890 = vcvt.f32.s32 %v884
    %v891 = vshll.u32 %v890, 16
    %v892 = vadd.s32 %v891, %v889
    %v893 = vsel %vm732, %v757, 2147483647
    %v894 = vand.u32 %v893, 65535
    %v895 = vshra.s32 %v893, 16
    %v896 = vcvt.s32.f32 %v894
    %v897 = vcvt.s32.f32 %v895
    %898 = vmin.xlane.f32.xlu0 %v897
    %v899 = vpop.xlane.xlu0 %898
    %vm900 = vcmp.eq.f32.partialorder %v897, %v899
    %v901 = vsel %vm900, %v896, inf
    %902 = vmin.xlane.f32.xlu0 %v901
    %v903 = vpop.xlane.xlu0 %902
    %v904 = vcvt.f32.s32 %v903
    %v905 = vcvt.f32.s32 %v899
    %v906 = vshll.u32 %v905, 16
    %v907 = vadd.s32 %v906, %v904
    %vm908 = vcmp.lt.s32.totalorder %v772, 31
    %v909 = vsel %vm908, %v772, 31
    %vm910 = vcmp.lt.s32.totalorder %v787, 31
    %v911 = vsel %vm910, %v787, 31
    %vm912 = vcmp.lt.s32.totalorder %v802, 31
    %v913 = vsel %vm912, %v802, 31
    %vm914 = vcmp.lt.s32.totalorder %v817, 31
    %v915 = vsel %vm914, %v817, 31
    %vm916 = vcmp.lt.s32.totalorder %v832, 31
    %v917 = vsel %vm916, %v832, 31
    %vm918 = vcmp.lt.s32.totalorder %v847, 31
    %v919 = vsel %vm918, %v847, 31
    %vm920 = vcmp.lt.s32.totalorder %v862, 31
    %v921 = vsel %vm920, %v862, 31
    %vm922 = vcmp.lt.s32.totalorder %v877, 31
    %v923 = vsel %vm922, %v877, 31
    %vm924 = vcmp.lt.s32.totalorder %v892, 31
    %v925 = vsel %vm924, %v892, 31
    %vm926 = vcmp.lt.s32.totalorder %v907, 31
    %v927 = vsel %vm926, %v907, 31
    %vm928 = vcmask 7168
    %v929 = vsel %vm928, %v237, %v461
    %v930 = vsel %vm928, %v239, %v463
    %v931 = vsel %vm928, %v241, %v465
    %v932 = vsel %vm928, %v243, %v467
    %v933 = vsel %vm928, %v245, %v469
    %v934 = vsel %vm928, %v247, %v471
    %v935 = vsel %vm928, %v249, %v473
    %v936 = vsel %vm928, %v251, %v475
    %v937 = vsel %vm928, %v253, %v477
    %v938 = vsel %vm928, %v255, %v479
    %vm939 = vcmask 15360
    %v940 = vsel %vm939, %v929, %v685
    %v941 = vsel %vm939, %v930, %v687
    %v942 = vsel %vm939, %v931, %v689
    %v943 = vsel %vm939, %v932, %v691
    %v944 = vsel %vm939, %v933, %v693
    %v945 = vsel %vm939, %v934, %v695
    %v946 = vsel %vm939, %v935, %v697
    %v947 = vsel %vm939, %v936, %v699
    %v948 = vsel %vm939, %v937, %v701
    %v949 = vsel %vm939, %v938, %v703
    %vm950 = vcmask 23552
    %v951 = vsel %vm950, %v940, %v909
    %v952 = vsel %vm950, %v941, %v911
    %v953 = vsel %vm950, %v942, %v913
    %v954 = vsel %vm950, %v943, %v915
    %v955 = vsel %vm950, %v944, %v917
    %v956 = vsel %vm950, %v945, %v919
    %v957 = vsel %vm950, %v946, %v921
    %v958 = vsel %vm950, %v947, %v923
    %v959 = vsel %vm950, %v948, %v925
    %v960 = vsel %vm950, %v949, %v927
    %vm961 = vcmask 31744
    %962 = vst.msk [vmem:[%s1] sm:$0xff] %vm961, %v951
    %963 = vst.msk [vmem:[%s1 + $0x8] sm:$0xff] %vm961, %v952
    %964 = vst.msk [vmem:[%s1 + $0x10] sm:$0xff] %vm961, %v953
    %965 = vst.msk [vmem:[%s1 + $0x18] sm:$0xff] %vm961, %v954
    %966 = vst.msk [vmem:[%s1 + $0x20] sm:$0xff] %vm961, %v955
    %967 = vst.msk [vmem:[%s1 + $0x28] sm:$0xff] %vm961, %v956
    %968 = vst.msk [vmem:[%s1 + $0x30] sm:$0xff] %vm961, %v957
    %969 = vst.msk [vmem:[%s1 + $0x38] sm:$0xff] %vm961, %v958
    %970 = vst.msk [vmem:[%s1 + $0x40] sm:$0xff] %vm961, %v959
    %vm971 = vcmask 26624
    %972 = vst.msk [vmem:[%s1 + $0x48] sm:$0x7] %vm971, %v960
    // Predicated region
    $region10: #{tpu_custom_call.1} parent=1 // pred_check
      _
    $region11: #{tpu_custom_call.1} parent=1 // pred_check_branch
      %974 = sbr.rel (0) target = $region13
    $region12: #{tpu_custom_call.1} parent=1 // pred_region
      _
    $region13: #{tpu_custom_call.1} parent=1 // pred_fallthru
      _
    // Predicated region
    $region14: #{tpu_custom_call.1} parent=1 // pred_check
      _
    $region15: #{tpu_custom_call.1} parent=1 // pred_check_branch
      %976 = sbr.rel (0) target = $region17
    $region16: #{tpu_custom_call.1} parent=1 // pred_region
      _
    $region17: #{tpu_custom_call.1} parent=1 // pred_fallthru
      _
    %977 = vsyncpa [#allocation3], 1

</llo_original>
